<compile_context>
chip_gen: v5e
topology: v5e:2x2
jax: 0.10.0
libtpu: 0.0.40
codegen_flags: <defaults>
</compile_context>

<pallas_src>
import jax
import jax.numpy as jnp
from jax.experimental import pallas as pl
from jax.experimental.pallas import tpu as pltpu

DIMS = (52, 152, 80, 72, 48, 2)
BN_EPS = 1e-5
OUT_LANES = 128  # final layer padded to a full lane width for dense stores


def _round_up(x, m):
    return ((x + m - 1) // m) * m


def _mlp_kernel(x_ref,
                w0, b0, w1, b1, w2, b2, w3, b3, w4, b4,
                out_ref):
    h = x_ref[...]
    # Hidden layers: Linear (with BN folded in) + ReLU.  Dropout == identity.
    for w, b in ((w0, b0), (w1, b1), (w2, b2), (w3, b3)):
        h = jnp.dot(h, w[...], preferred_element_type=jnp.float32) + b[...]
        h = jnp.maximum(h, 0.0)
    # Final layer is padded to OUT_LANES columns (cols >= 2 are zero).
    out = jnp.dot(h, w4[...], preferred_element_type=jnp.float32) + b4[...]
    # softplus with PyTorch's linear-above-threshold(=20) behaviour, applied
    # to the var column (lane 1) only; other lanes pass through unchanged.
    sp = jnp.where(out > 20.0, out, jnp.log1p(jnp.exp(jnp.minimum(out, 20.0))))
    lane = jax.lax.broadcasted_iota(jnp.int32, out.shape, 1)
    out_ref[...] = jnp.where(lane == 1, sp, out)


def mlp_forward(x, params, *, tb=1024):
    """x: (B, 52) float32.  params: list of 5 (W:(in,out), b:(1,out)) pairs.

    Returns (mean, var), each shape (B,) float32.
    """
    B = x.shape[0]
    # Effective batch tile: multiple of 8 sublanes, no bigger than needed.
    tb_eff = min(tb, _round_up(B, 8))
    B_pad = _round_up(B, tb_eff)
    if B_pad != B:
        x = jnp.pad(x, ((0, B_pad - B), (0, 0)))

    # Pad the last layer to a full 128-lane output so stores are unmasked.
    w4, b4 = params[4]
    w4p = jnp.pad(w4, ((0, 0), (0, OUT_LANES - w4.shape[1])))
    b4p = jnp.pad(b4, ((0, 0), (0, OUT_LANES - b4.shape[1])))
    flat = [p for pair in params[:4] for p in pair] + [w4p, b4p]

    in_specs = [pl.BlockSpec((tb_eff, DIMS[0]), lambda i: (i, 0))]
    for p in flat:
        in_specs.append(pl.BlockSpec(p.shape, lambda i: (0, 0)))

    out_spec = pl.BlockSpec((tb_eff, OUT_LANES), lambda i: (i, 0))

    out = pl.pallas_call(
        _mlp_kernel,
        out_shape=jax.ShapeDtypeStruct((B_pad, OUT_LANES), jnp.float32),
        grid_spec=pltpu.PrefetchScalarGridSpec(
            num_scalar_prefetch=0,
            grid=(B_pad // tb_eff,),
            in_specs=in_specs,
            out_specs=out_spec),
        compiler_params=pltpu.CompilerParams(
            dimension_semantics=("parallel",)),
    )(x, *flat)
    return out[:B, 0], out[:B, 1]


def init_params(key):
    """Deterministic init mirroring the PyTorch layer shapes, with BN folded."""
    params = []
    keys = jax.random.split(key, 32)
    ki = 0
    for li in range(5):
        fan_in, fan_out = DIMS[li], DIMS[li + 1]
        bound = 1.0 / (fan_in ** 0.5)
        w = jax.random.uniform(keys[ki], (fan_in, fan_out), jnp.float32,
                               -bound, bound); ki += 1
        b = jax.random.uniform(keys[ki], (fan_out,), jnp.float32,
                               -bound, bound); ki += 1
        if li < 4:  # layers followed by BatchNorm1d in the PyTorch model
            gamma = jax.random.uniform(keys[ki], (fan_out,), jnp.float32,
                                       0.5, 1.5); ki += 1
            beta = jax.random.uniform(keys[ki], (fan_out,), jnp.float32,
                                      -0.1, 0.1); ki += 1
            rmean = 0.1 * jax.random.normal(keys[ki], (fan_out,),
                                            jnp.float32); ki += 1
            rvar = jax.random.uniform(keys[ki], (fan_out,), jnp.float32,
                                      0.5, 1.5); ki += 1
            scale = gamma / jnp.sqrt(rvar + BN_EPS)
            w = w * scale[None, :]
            b = b * scale + (beta - rmean * scale)
        params.append((w, b[None, :]))
    return params


def _reference(x, params):
    """Pure-JAX reference of the same (eval-mode) forward pass."""
    h = x
    for w, b in params[:-1]:
        h = jnp.maximum(h @ w + b, 0.0)
    out = h @ params[-1][0] + params[-1][1]
    mean = out[:, 0]
    v = out[:, 1]
    var = jnp.where(v > 20.0, v, jnp.log1p(jnp.exp(jnp.minimum(v, 20.0))))
    return mean, var


def _check(B, kx, params):
    x = jax.random.normal(kx, (B, DIMS[0]), jnp.float32)
    mean, var = mlp_forward(x, params)
    jax.block_until_ready((mean, var))
    ref_mean, ref_var = _reference(x, params)
    assert mean.shape == (B,) and var.shape == (B,)
    assert jnp.allclose(mean, ref_mean, atol=1e-4, rtol=1e-4)
    assert jnp.allclose(var, ref_var, atol=1e-4, rtol=1e-4)
    assert bool(jnp.all(var >= 0.0))


if __name__ == "__main__":
    key = jax.random.PRNGKey(0)
    kx1, kx2, kp = jax.random.split(key, 3)
    params = init_params(kp)

    # Small batch (tile shrinks to the batch).
    _check(8, kx1, params)
    # Batch not a multiple of the tile / of 8 (exercises padding path).
    _check(260, kx2, params)

    print("KERNEL_OK")
</pallas_src>

<mosaic_0001>
module attributes {stable_mosaic.version = 11 : i64} {
  func.func @_mlp_kernel(%arg0: i32, %arg1: memref<8x52xf32, #tpu.memory_space<vmem>>, %arg2: memref<52x152xf32, #tpu.memory_space<vmem>>, %arg3: memref<1x152xf32, #tpu.memory_space<vmem>>, %arg4: memref<152x80xf32, #tpu.memory_space<vmem>>, %arg5: memref<1x80xf32, #tpu.memory_space<vmem>>, %arg6: memref<80x72xf32, #tpu.memory_space<vmem>>, %arg7: memref<1x72xf32, #tpu.memory_space<vmem>>, %arg8: memref<72x48xf32, #tpu.memory_space<vmem>>, %arg9: memref<1x48xf32, #tpu.memory_space<vmem>>, %arg10: memref<48x128xf32, #tpu.memory_space<vmem>>, %arg11: memref<1x128xf32, #tpu.memory_space<vmem>>, %arg12: memref<8x128xf32, #tpu.memory_space<vmem>>) attributes {dimension_semantics = [#tpu.dimension_semantics<parallel>], iteration_bounds = array<i64: 1>, scalar_prefetch = 0 : i64, scratch_operands = 0 : i64, tpu.core_type = #tpu.core_type<tc>, window_params = [{transform_indices = @transform_0, window_bounds = array<i64: 8, 52>}, {pipeline_mode = #tpu.pipeline_mode<synchronous>, transform_indices = @transform_1, window_bounds = array<i64: 52, 152>}, {pipeline_mode = #tpu.pipeline_mode<synchronous>, transform_indices = @transform_2, window_bounds = array<i64: 1, 152>}, {pipeline_mode = #tpu.pipeline_mode<synchronous>, transform_indices = @transform_3, window_bounds = array<i64: 152, 80>}, {pipeline_mode = #tpu.pipeline_mode<synchronous>, transform_indices = @transform_4, window_bounds = array<i64: 1, 80>}, {pipeline_mode = #tpu.pipeline_mode<synchronous>, transform_indices = @transform_5, window_bounds = array<i64: 80, 72>}, {pipeline_mode = #tpu.pipeline_mode<synchronous>, transform_indices = @transform_6, window_bounds = array<i64: 1, 72>}, {pipeline_mode = #tpu.pipeline_mode<synchronous>, transform_indices = @transform_7, window_bounds = array<i64: 72, 48>}, {pipeline_mode = #tpu.pipeline_mode<synchronous>, transform_indices = @transform_8, window_bounds = array<i64: 1, 48>}, {pipeline_mode = #tpu.pipeline_mode<synchronous>, transform_indices = @transform_9, window_bounds = array<i64: 48, 128>}, {pipeline_mode = #tpu.pipeline_mode<synchronous>, transform_indices = @transform_10, window_bounds = array<i64: 1, 128>}, {transform_indices = @transform_11, window_bounds = array<i64: 8, 128>}]} {
    %c0 = arith.constant 0 : index
    %c0_0 = arith.constant 0 : index
    %0 = vector.load %arg1[%c0, %c0_0] : memref<8x52xf32, #tpu.memory_space<vmem>>, vector<8x52xf32>
    %c0_1 = arith.constant 0 : index
    %c0_2 = arith.constant 0 : index
    %1 = vector.load %arg2[%c0_1, %c0_2] : memref<52x152xf32, #tpu.memory_space<vmem>>, vector<52x152xf32>
    %cst = arith.constant dense<0.000000e+00> : vector<8x152xf32>
    %2 = tpu.matmul %0, %1, %cst {dimension_numbers = #tpu.dot_dimension_numbers<[1], [0], [0], [1], [0, 0, 1, 1], [], []>} : vector<8x52xf32>, vector<52x152xf32>, vector<8x152xf32> -> vector<8x152xf32>
    %c0_3 = arith.constant 0 : index
    %c0_4 = arith.constant 0 : index
    %3 = vector.load %arg3[%c0_3, %c0_4] : memref<1x152xf32, #tpu.memory_space<vmem>>, vector<1x152xf32>
    %4 = vector.broadcast %3 : vector<1x152xf32> to vector<8x152xf32>
    %5 = arith.addf %2, %4 : vector<8x152xf32>
    %cst_5 = arith.constant 0.000000e+00 : f32
    %6 = vector.broadcast %cst_5 : f32 to vector<8x152xf32>
    %7 = arith.maximumf %5, %6 : vector<8x152xf32>
    %c0_6 = arith.constant 0 : index
    %c0_7 = arith.constant 0 : index
    %8 = vector.load %arg4[%c0_6, %c0_7] : memref<152x80xf32, #tpu.memory_space<vmem>>, vector<152x80xf32>
    %cst_8 = arith.constant dense<0.000000e+00> : vector<8x80xf32>
    %9 = tpu.matmul %7, %8, %cst_8 {dimension_numbers = #tpu.dot_dimension_numbers<[1], [0], [0], [1], [0, 0, 1, 1], [], []>} : vector<8x152xf32>, vector<152x80xf32>, vector<8x80xf32> -> vector<8x80xf32>
    %c0_9 = arith.constant 0 : index
    %c0_10 = arith.constant 0 : index
    %10 = vector.load %arg5[%c0_9, %c0_10] : memref<1x80xf32, #tpu.memory_space<vmem>>, vector<1x80xf32>
    %11 = vector.broadcast %10 : vector<1x80xf32> to vector<8x80xf32>
    %12 = arith.addf %9, %11 : vector<8x80xf32>
    %cst_11 = arith.constant 0.000000e+00 : f32
    %13 = vector.broadcast %cst_11 : f32 to vector<8x80xf32>
    %14 = arith.maximumf %12, %13 : vector<8x80xf32>
    %c0_12 = arith.constant 0 : index
    %c0_13 = arith.constant 0 : index
    %15 = vector.load %arg6[%c0_12, %c0_13] : memref<80x72xf32, #tpu.memory_space<vmem>>, vector<80x72xf32>
    %cst_14 = arith.constant dense<0.000000e+00> : vector<8x72xf32>
    %16 = tpu.matmul %14, %15, %cst_14 {dimension_numbers = #tpu.dot_dimension_numbers<[1], [0], [0], [1], [0, 0, 1, 1], [], []>} : vector<8x80xf32>, vector<80x72xf32>, vector<8x72xf32> -> vector<8x72xf32>
    %c0_15 = arith.constant 0 : index
    %c0_16 = arith.constant 0 : index
    %17 = vector.load %arg7[%c0_15, %c0_16] : memref<1x72xf32, #tpu.memory_space<vmem>>, vector<1x72xf32>
    %18 = vector.broadcast %17 : vector<1x72xf32> to vector<8x72xf32>
    %19 = arith.addf %16, %18 : vector<8x72xf32>
    %cst_17 = arith.constant 0.000000e+00 : f32
    %20 = vector.broadcast %cst_17 : f32 to vector<8x72xf32>
    %21 = arith.maximumf %19, %20 : vector<8x72xf32>
    %c0_18 = arith.constant 0 : index
    %c0_19 = arith.constant 0 : index
    %22 = vector.load %arg8[%c0_18, %c0_19] : memref<72x48xf32, #tpu.memory_space<vmem>>, vector<72x48xf32>
    %cst_20 = arith.constant dense<0.000000e+00> : vector<8x48xf32>
    %23 = tpu.matmul %21, %22, %cst_20 {dimension_numbers = #tpu.dot_dimension_numbers<[1], [0], [0], [1], [0, 0, 1, 1], [], []>} : vector<8x72xf32>, vector<72x48xf32>, vector<8x48xf32> -> vector<8x48xf32>
    %c0_21 = arith.constant 0 : index
    %c0_22 = arith.constant 0 : index
    %24 = vector.load %arg9[%c0_21, %c0_22] : memref<1x48xf32, #tpu.memory_space<vmem>>, vector<1x48xf32>
    %25 = vector.broadcast %24 : vector<1x48xf32> to vector<8x48xf32>
    %26 = arith.addf %23, %25 : vector<8x48xf32>
    %cst_23 = arith.constant 0.000000e+00 : f32
    %27 = vector.broadcast %cst_23 : f32 to vector<8x48xf32>
    %28 = arith.maximumf %26, %27 : vector<8x48xf32>
    %c0_24 = arith.constant 0 : index
    %c0_25 = arith.constant 0 : index
    %29 = vector.load %arg10[%c0_24, %c0_25] : memref<48x128xf32, #tpu.memory_space<vmem>>, vector<48x128xf32>
    %cst_26 = arith.constant dense<0.000000e+00> : vector<8x128xf32>
    %30 = tpu.matmul %28, %29, %cst_26 {dimension_numbers = #tpu.dot_dimension_numbers<[1], [0], [0], [1], [0, 0, 1, 1], [], []>} : vector<8x48xf32>, vector<48x128xf32>, vector<8x128xf32> -> vector<8x128xf32>
    %c0_27 = arith.constant 0 : index
    %c0_28 = arith.constant 0 : index
    %31 = vector.load %arg11[%c0_27, %c0_28] : memref<1x128xf32, #tpu.memory_space<vmem>>, vector<1x128xf32>
    %32 = vector.broadcast %31 : vector<1x128xf32> to vector<8x128xf32>
    %33 = arith.addf %30, %32 : vector<8x128xf32>
    %cst_29 = arith.constant 2.000000e+01 : f32
    %34 = vector.broadcast %cst_29 : f32 to vector<8x128xf32>
    %35 = arith.cmpf ogt, %33, %34 : vector<8x128xf32>
    %cst_30 = arith.constant 2.000000e+01 : f32
    %36 = vector.broadcast %cst_30 : f32 to vector<8x128xf32>
    %37 = arith.minimumf %33, %36 : vector<8x128xf32>
    %38 = math.exp %37 : vector<8x128xf32>
    %39 = math.log1p %38 : vector<8x128xf32>
    %40 = arith.select %35, %33, %39 : vector<8x128xi1>, vector<8x128xf32>
    %41 = tpu.iota {dimensions = array<i32: 1>} : vector<8x128xi32>
    %c1_i32 = arith.constant 1 : i32
    %42 = vector.broadcast %c1_i32 : i32 to vector<8x128xi32>
    %43 = arith.cmpi eq, %41, %42 : vector<8x128xi32>
    %44 = arith.select %43, %40, %33 : vector<8x128xi1>, vector<8x128xf32>
    %c0_31 = arith.constant 0 : index
    %c0_32 = arith.constant 0 : index
    %45 = vector.load %arg12[%c0_31, %c0_32] : memref<8x128xf32, #tpu.memory_space<vmem>>, vector<8x128xf32>
    tpu.vector_store %arg12[%c0_31, %c0_32], %44 {strides = array<i32>} : memref<8x128xf32, #tpu.memory_space<vmem>>, vector<8x128xf32>,
    return
  }
  func.func @transform_0(%arg0: i32) -> (i32, i32) {
    %c0_i32 = arith.constant 0 : i32
    %c0_i32_0 = arith.constant 0 : i32
    return %arg0, %c0_i32 : i32, i32
  }
  func.func @transform_1(%arg0: i32) -> (i32, i32) {
    %c0_i32 = arith.constant 0 : i32
    %c0_i32_0 = arith.constant 0 : i32
    %c0_i32_1 = arith.constant 0 : i32
    return %c0_i32, %c0_i32_0 : i32, i32
  }
  func.func @transform_2(%arg0: i32) -> (i32, i32) {
    %c0_i32 = arith.constant 0 : i32
    %c0_i32_0 = arith.constant 0 : i32
    %c0_i32_1 = arith.constant 0 : i32
    return %c0_i32, %c0_i32_0 : i32, i32
  }
  func.func @transform_3(%arg0: i32) -> (i32, i32) {
    %c0_i32 = arith.constant 0 : i32
    %c0_i32_0 = arith.constant 0 : i32
    %c0_i32_1 = arith.constant 0 : i32
    return %c0_i32, %c0_i32_0 : i32, i32
  }
  func.func @transform_4(%arg0: i32) -> (i32, i32) {
    %c0_i32 = arith.constant 0 : i32
    %c0_i32_0 = arith.constant 0 : i32
    %c0_i32_1 = arith.constant 0 : i32
    return %c0_i32, %c0_i32_0 : i32, i32
  }
  func.func @transform_5(%arg0: i32) -> (i32, i32) {
    %c0_i32 = arith.constant 0 : i32
    %c0_i32_0 = arith.constant 0 : i32
    %c0_i32_1 = arith.constant 0 : i32
    return %c0_i32, %c0_i32_0 : i32, i32
  }
  func.func @transform_6(%arg0: i32) -> (i32, i32) {
    %c0_i32 = arith.constant 0 : i32
    %c0_i32_0 = arith.constant 0 : i32
    %c0_i32_1 = arith.constant 0 : i32
    return %c0_i32, %c0_i32_0 : i32, i32
  }
  func.func @transform_7(%arg0: i32) -> (i32, i32) {
    %c0_i32 = arith.constant 0 : i32
    %c0_i32_0 = arith.constant 0 : i32
    %c0_i32_1 = arith.constant 0 : i32
    return %c0_i32, %c0_i32_0 : i32, i32
  }
  func.func @transform_8(%arg0: i32) -> (i32, i32) {
    %c0_i32 = arith.constant 0 : i32
    %c0_i32_0 = arith.constant 0 : i32
    %c0_i32_1 = arith.constant 0 : i32
    return %c0_i32, %c0_i32_0 : i32, i32
  }
  func.func @transform_9(%arg0: i32) -> (i32, i32) {
    %c0_i32 = arith.constant 0 : i32
    %c0_i32_0 = arith.constant 0 : i32
    %c0_i32_1 = arith.constant 0 : i32
    return %c0_i32, %c0_i32_0 : i32, i32
  }
  func.func @transform_10(%arg0: i32) -> (i32, i32) {
    %c0_i32 = arith.constant 0 : i32
    %c0_i32_0 = arith.constant 0 : i32
    %c0_i32_1 = arith.constant 0 : i32
    return %c0_i32, %c0_i32_0 : i32, i32
  }
  func.func @transform_11(%arg0: i32) -> (i32, i32) {
    %c0_i32 = arith.constant 0 : i32
    %c0_i32_0 = arith.constant 0 : i32
    return %arg0, %c0_i32 : i32, i32
  }
}

</mosaic_0001>

<llo_original>
// kernel: tpu_custom_call.1
$region0: #{tpu_custom_call.1}
  #allocation0 [shape = 'u32[]', space=smem, size = 0x4, offset = 0x4, fixed_abs, tag = 'smem constant byte address 0x4 - core index']
  #allocation1 [shape = 'u32[72,128]{1,0:T(1,128)}', space=vmem, size = 0x9000, scoped, tag = 'internal scratch']
  %s0 = inlined_call_operand.hbm [shape: f32[8,52], index: 0, kind: input, shape index: {}]
  %s1 = inlined_call_operand.hbm [shape: f32[52,152], index: 1, kind: input, shape index: {}]
  %s2 = inlined_call_operand.vmem [shape: f32[1,152], index: 2, kind: input, shape index: {}]
  %s3 = inlined_call_operand.vmem [shape: f32[152,80], index: 3, kind: input, shape index: {}]
  %s4 = inlined_call_operand.vmem [shape: f32[1,80], index: 4, kind: input, shape index: {}]
  %s5 = inlined_call_operand.vmem [shape: f32[80,72], index: 5, kind: input, shape index: {}]
  %s6 = inlined_call_operand.vmem [shape: f32[1,72], index: 6, kind: input, shape index: {}]
  %s7 = inlined_call_operand.vmem [shape: f32[72,48], index: 7, kind: input, shape index: {}]
  %s8 = inlined_call_operand.vmem [shape: f32[1,48], index: 8, kind: input, shape index: {}]
  %s9 = inlined_call_operand.vmem [shape: f32[48,128], index: 9, kind: input, shape index: {}]
  %s10 = inlined_call_operand.vmem [shape: f32[1,128], index: 10, kind: input, shape index: {}]
  %s11 = inlined_call_operand.hbm [shape: f32[8,128], index: 11, kind: output, shape index: {}]
  %s12 = sld [smem:[#allocation0]]
  $region62: #{tpu_custom_call.1} parent=0
    _
  %s14 = ssub.s32 1, %s12
  %s15 = scalar_select 0, %s14, %s12
  $region1: #{tpu_custom_call.1} parent=0
    #allocation2 [shape = 'u8[4096]{0}', space=vmem, size = 0x1000, scoped, tag = 'input window, operand 0, single buffered']
    #allocation3 [shape = 's32[1]{0}', space=sflag, size = 0x4, scoped, tag = 'scoped memory for tpu_custom_call.1']
    #allocation4 [shape = 's32[1]{0}', space=sflag, size = 0x4, scoped, tag = 'scoped memory for tpu_custom_call.1']
    #allocation5 [shape = 'u8[57344]{0}', space=vmem, size = 0xe000, scoped, tag = 'input window, operand 1, single buffered']
    #allocation6 [shape = 's32[1]{0}', space=sflag, size = 0x4, scoped, tag = 'scoped memory for tpu_custom_call.1']
    #allocation7 [shape = 'u8[4096]{0}', space=vmem, size = 0x1000, scoped, tag = 'output window, operand 0, single buffered']
    %16 = vsyncpa [#allocation3], 0
    %17 = vsyncpa [#allocation6], 0
    %18 = vsyncpa [#allocation4], 0
    // Predicated region
    $region2: #{tpu_custom_call.1} parent=1 // pred_check
      _
    $region3: #{tpu_custom_call.1} parent=1 // pred_check_branch
      %20 = sbr.rel (0) target = $region5
    $region4: #{tpu_custom_call.1} parent=1 // pred_region
      %22 = vsyncadd [#allocation3], 0
      %s24 = sshll.u32 %s0, 4
      %s25 = int_to_ptr.hbm [resolvable:$true] %s24
      %s26 = sshll.u32 [#allocation2], 4
      %s27 = int_to_ptr.vmem [resolvable:$true] %s26
      %29 = dma.hbm_to_vmem [thread:$0]  %s25, 128, %s27, [#allocation3]
    $region5: #{tpu_custom_call.1} parent=1 // pred_fallthru
      _
    // Predicated region
    $region6: #{tpu_custom_call.1} parent=1 // pred_check
      _
    $region7: #{tpu_custom_call.1} parent=1 // pred_check_branch
      %31 = sbr.rel (0) target = $region9
    $region8: #{tpu_custom_call.1} parent=1 // pred_region
      %33 = vsyncadd [#allocation6], 0
      %s34 = sshll.u32 %s1, 4
      %s35 = int_to_ptr.hbm [resolvable:$true] %s34
      %s36 = sshll.u32 [#allocation5], 4
      %s37 = int_to_ptr.vmem [resolvable:$true] %s36
      %42 = dma.hbm_to_vmem [thread:$0]  %s35, 1792, %s37, [#allocation6], 256, 256, 16
    $region9: #{tpu_custom_call.1} parent=1 // pred_fallthru
      _
    // Predicated region
    $region10: #{tpu_custom_call.1} parent=1 // pred_check
      _
    $region11: #{tpu_custom_call.1} parent=1 // pred_check_branch
      %44 = sbr.rel (0) target = $region13
    $region12: #{tpu_custom_call.1} parent=1 // pred_region
      _
    $region13: #{tpu_custom_call.1} parent=1 // pred_fallthru
      _
    // Predicated region
    $region14: #{tpu_custom_call.1} parent=1 // pred_check
      _
    $region15: #{tpu_custom_call.1} parent=1 // pred_check_branch
      %46 = sbr.rel (0) target = $region17
    $region16: #{tpu_custom_call.1} parent=1 // pred_region
      _
    $region17: #{tpu_custom_call.1} parent=1 // pred_fallthru
      _
    // Predicated region
    $region18: #{tpu_custom_call.1} parent=1 // pred_check
      _
    $region19: #{tpu_custom_call.1} parent=1 // pred_check_branch
      %48 = sbr.rel (0) target = $region21
    $region20: #{tpu_custom_call.1} parent=1 // pred_region
      _
    $region21: #{tpu_custom_call.1} parent=1 // pred_fallthru
      _
    // Predicated region
    $region22: #{tpu_custom_call.1} parent=1 // pred_check
      _
    $region23: #{tpu_custom_call.1} parent=1 // pred_check_branch
      %50 = sbr.rel (0) target = $region25
    $region24: #{tpu_custom_call.1} parent=1 // pred_region
      _
    $region25: #{tpu_custom_call.1} parent=1 // pred_fallthru
      _
    // Predicated region
    $region26: #{tpu_custom_call.1} parent=1 // pred_check
      _
    $region27: #{tpu_custom_call.1} parent=1 // pred_check_branch
      %52 = sbr.rel (0) target = $region29
    $region28: #{tpu_custom_call.1} parent=1 // pred_region
      _
    $region29: #{tpu_custom_call.1} parent=1 // pred_fallthru
      _
    // Predicated region
    $region30: #{tpu_custom_call.1} parent=1 // pred_check
      _
    $region31: #{tpu_custom_call.1} parent=1 // pred_check_branch
      %54 = sbr.rel (0) target = $region33
    $region32: #{tpu_custom_call.1} parent=1 // pred_region
      _
    $region33: #{tpu_custom_call.1} parent=1 // pred_fallthru
      _
    // Predicated region
    $region34: #{tpu_custom_call.1} parent=1 // pred_check
      _
    $region35: #{tpu_custom_call.1} parent=1 // pred_check_branch
      %56 = sbr.rel (0) target = $region37
    $region36: #{tpu_custom_call.1} parent=1 // pred_region
      _
    $region37: #{tpu_custom_call.1} parent=1 // pred_fallthru
      _
    // Predicated region
    $region38: #{tpu_custom_call.1} parent=1 // pred_check
      _
    $region39: #{tpu_custom_call.1} parent=1 // pred_check_branch
      %58 = sbr.rel (0) target = $region41
    $region40: #{tpu_custom_call.1} parent=1 // pred_region
      _
    $region41: #{tpu_custom_call.1} parent=1 // pred_fallthru
      _
    // Predicated region
    $region42: #{tpu_custom_call.1} parent=1 // pred_check
      _
    $region43: #{tpu_custom_call.1} parent=1 // pred_check_branch
      %60 = sbr.rel (0) target = $region45
    $region44: #{tpu_custom_call.1} parent=1 // pred_region
      _
    $region45: #{tpu_custom_call.1} parent=1 // pred_fallthru
      _
    // Predicated region
    $region46: #{tpu_custom_call.1} parent=1 // pred_check
      _
    $region47: #{tpu_custom_call.1} parent=1 // pred_check_branch
      %62 = sbr.rel (0) target = $region49
    $region48: #{tpu_custom_call.1} parent=1 // pred_region
      %64 = dma.done [#allocation3], 128
    $region49: #{tpu_custom_call.1} parent=1 // pred_fallthru
      _
    // Predicated region
    $region50: #{tpu_custom_call.1} parent=1 // pred_check
      _
    $region51: #{tpu_custom_call.1} parent=1 // pred_check_branch
      %66 = sbr.rel (0) target = $region53
    $region52: #{tpu_custom_call.1} parent=1 // pred_region
      %68 = dma.done [#allocation6], 1792
    $region53: #{tpu_custom_call.1} parent=1 // pred_fallthru
      _
    %v69 = vld [vmem:[#allocation2] sm:$0xff]
    %v70 = vld [vmem:[#allocation5] sm:$0xff]
    %v71 = vld [vmem:[#allocation5 + $0x8] sm:$0xff]
    %v72 = vld [vmem:[#allocation5 + $0x10] sm:$0xff]
    %v73 = vld [vmem:[#allocation5 + $0x18] sm:$0xff]
    %v74 = vld [vmem:[#allocation5 + $0x20] sm:$0xff]
    %v75 = vld [vmem:[#allocation5 + $0x28] sm:$0xff]
    %v76 = vld [vmem:[#allocation5 + $0x30] sm:$0xff]
    %v77 = vld [vmem:[#allocation5 + $0x38] sm:$0xff]
    %v78 = vld [vmem:[#allocation5 + $0x40] sm:$0xff]
    %v79 = vld [vmem:[#allocation5 + $0x48] sm:$0xff]
    %v80 = vld [vmem:[#allocation5 + $0x50] sm:$0xff]
    %v81 = vld [vmem:[#allocation5 + $0x58] sm:$0xff]
    %v82 = vld [vmem:[#allocation5 + $0x60] sm:$0xf]
    %v83 = vld [vmem:[#allocation5 + $0x68] sm:$0xf]
    %v84 = vld [vmem:[%s2] sm:$0x3]
    %v86 = vperm.slane %v84, 0
    %v87 = vperm.slane %v84, 1
    %vm90 = vcmask 424960
    %v92 = vsel %vm90, %v69, 0
    %vm94 = vcmask 1043456
    %v96 = vsel %vm94, %v82, 0
    %v99 = vsel %vm94, %v83, 0
    %101 = vmatpush.msra.mxu0 0.0
    %102 = vmatpush.msra.mxu0 0.0
    %103 = vmatpush.msra.mxu0 0.0
    %104 = vmatpush.msra.mxu0 0.0
    %105 = vmatpush.msra.mxu0 0.0
    %106 = vmatpush.msra.mxu0 0.0
    %107 = vmatpush.msra.mxu0 0.0
    %108 = vmatpush.msra.mxu0 0.0
    %109 = vmatpush.msra.mxu0 0.0
    %110 = vmatpush.msra.mxu0 %v96
    %111 = vmatpush.msra.mxu0 %v80
    %112 = vmatpush.msra.mxu0 %v78
    %113 = vmatpush.msra.mxu0 %v76
    %114 = vmatpush.msra.mxu0 %v74
    %115 = vmatpush.msra.mxu0 %v72
    %116 = vmatpush.msra.mxu0 %v70
    %117 = vmatmul.f32.gmra.mxu0 %v92
    %v118 = vpop.f32.mrf.mxu0
    %v119 = vadd.f32 %v86, %v118
    %120 = vdwg.mxu0
    %121 = vmatpush.msra.mxu0 0.0
    %122 = vmatpush.msra.mxu0 0.0
    %123 = vmatpush.msra.mxu0 0.0
    %124 = vmatpush.msra.mxu0 0.0
    %125 = vmatpush.msra.mxu0 0.0
    %126 = vmatpush.msra.mxu0 0.0
    %127 = vmatpush.msra.mxu0 0.0
    %128 = vmatpush.msra.mxu0 0.0
    %129 = vmatpush.msra.mxu0 0.0
    %130 = vmatpush.msra.mxu0 %v99
    %131 = vmatpush.msra.mxu0 %v81
    %132 = vmatpush.msra.mxu0 %v79
    %133 = vmatpush.msra.mxu0 %v77
    %134 = vmatpush.msra.mxu0 %v75
    %135 = vmatpush.msra.mxu0 %v73
    %136 = vmatpush.msra.mxu0 %v71
    %137 = vmatmul.f32.gmra.mxu0 %v92
    %v138 = vpop.f32.mrf.mxu0
    %v139 = vadd.f32 %v87, %v138
    %140 = vdwg.mxu0
    %v141 = vmax.f32 %v119, 0.0
    %v142 = vmax.f32 %v139, 0.0
    %v143 = vld [vmem:[%s3] sm:$0xff]
    %v144 = vld [vmem:[%s3 + $0x8] sm:$0xff]
    %v145 = vld [vmem:[%s3 + $0x10] sm:$0xff]
    %v146 = vld [vmem:[%s3 + $0x18] sm:$0xff]
    %v147 = vld [vmem:[%s3 + $0x20] sm:$0xff]
    %v148 = vld [vmem:[%s3 + $0x28] sm:$0xff]
    %v149 = vld [vmem:[%s3 + $0x30] sm:$0xff]
    %v150 = vld [vmem:[%s3 + $0x38] sm:$0xff]
    %v151 = vld [vmem:[%s3 + $0x40] sm:$0xff]
    %v152 = vld [vmem:[%s3 + $0x48] sm:$0xff]
    %v153 = vld [vmem:[%s3 + $0x50] sm:$0xff]
    %v154 = vld [vmem:[%s3 + $0x58] sm:$0xff]
    %v155 = vld [vmem:[%s3 + $0x60] sm:$0xff]
    %v156 = vld [vmem:[%s3 + $0x68] sm:$0xff]
    %v157 = vld [vmem:[%s3 + $0x70] sm:$0xff]
    %v158 = vld [vmem:[%s3 + $0x78] sm:$0xff]
    %v159 = vld [vmem:[%s3 + $0x80] sm:$0xff]
    %v160 = vld [vmem:[%s3 + $0x88] sm:$0xff]
    %v161 = vld [vmem:[%s3 + $0x90] sm:$0xff]
    %v162 = vld [vmem:[%s4] sm:$0x1]
    %v164 = vperm.slane %v162, 0
    %vm166 = vcmask 195584
    %v168 = vsel %vm166, %v142, 0
    %170 = vmatpush.msra.mxu0 %v158
    %171 = vmatpush.msra.mxu0 %v157
    %172 = vmatpush.msra.mxu0 %v156
    %173 = vmatpush.msra.mxu0 %v155
    %174 = vmatpush.msra.mxu0 %v154
    %175 = vmatpush.msra.mxu0 %v153
    %176 = vmatpush.msra.mxu0 %v152
    %177 = vmatpush.msra.mxu0 %v151
    %178 = vmatpush.msra.mxu0 %v150
    %179 = vmatpush.msra.mxu0 %v149
    %180 = vmatpush.msra.mxu0 %v148
    %181 = vmatpush.msra.mxu0 %v147
    %182 = vmatpush.msra.mxu0 %v146
    %183 = vmatpush.msra.mxu0 %v145
    %184 = vmatpush.msra.mxu0 %v144
    %185 = vmatpush.msra.mxu0 %v143
    %186 = vmatmul.f32.gmra.mxu0 %v141
    %v187 = vpop.f32.mrf.mxu0
    %v188 = vadd.f32 %v164, %v187
    %189 = vdwg.mxu0
    %190 = vmatpush.msra.mxu0 0.0
    %191 = vmatpush.msra.mxu0 0.0
    %192 = vmatpush.msra.mxu0 0.0
    %193 = vmatpush.msra.mxu0 0.0
    %194 = vmatpush.msra.mxu0 0.0
    %195 = vmatpush.msra.mxu0 0.0
    %196 = vmatpush.msra.mxu0 0.0
    %197 = vmatpush.msra.mxu0 0.0
    %198 = vmatpush.msra.mxu0 0.0
    %199 = vmatpush.msra.mxu0 0.0
    %200 = vmatpush.msra.mxu0 0.0
    %201 = vmatpush.msra.mxu0 0.0
    %202 = vmatpush.msra.mxu0 0.0
    %203 = vmatpush.msra.mxu0 %v161
    %204 = vmatpush.msra.mxu0 %v160
    %205 = vmatpush.msra.mxu0 %v159
    %206 = vmatmul.f32.gmra.mxu0 %v168
    %v207 = vpop.f32.mrf.mxu0
    %v208 = vadd.f32 %v188, %v207
    %209 = vdwg.mxu0
    %v210 = vmax.f32 %v208, 0.0
    %v211 = vld [vmem:[%s5] sm:$0xff]
    %v212 = vld [vmem:[%s5 + $0x8] sm:$0xff]
    %v213 = vld [vmem:[%s5 + $0x10] sm:$0xff]
    %v214 = vld [vmem:[%s5 + $0x18] sm:$0xff]
    %v215 = vld [vmem:[%s5 + $0x20] sm:$0xff]
    %v216 = vld [vmem:[%s5 + $0x28] sm:$0xff]
    %v217 = vld [vmem:[%s5 + $0x30] sm:$0xff]
    %v218 = vld [vmem:[%s5 + $0x38] sm:$0xff]
    %v219 = vld [vmem:[%s5 + $0x40] sm:$0xff]
    %v220 = vld [vmem:[%s5 + $0x48] sm:$0xff]
    %v221 = vld [vmem:[%s6] sm:$0x1]
    %v223 = vperm.slane %v221, 0
    %vm225 = vcmask 654336
    %v227 = vsel %vm225, %v210, 0
    %229 = vmatpush.msra.mxu0 0.0
    %230 = vmatpush.msra.mxu0 0.0
    %231 = vmatpush.msra.mxu0 0.0
    %232 = vmatpush.msra.mxu0 0.0
    %233 = vmatpush.msra.mxu0 0.0
    %234 = vmatpush.msra.mxu0 0.0
    %235 = vmatpush.msra.mxu0 %v220
    %236 = vmatpush.msra.mxu0 %v219
    %237 = vmatpush.msra.mxu0 %v218
    %238 = vmatpush.msra.mxu0 %v217
    %239 = vmatpush.msra.mxu0 %v216
    %240 = vmatpush.msra.mxu0 %v215
    %241 = vmatpush.msra.mxu0 %v214
    %242 = vmatpush.msra.mxu0 %v213
    %243 = vmatpush.msra.mxu0 %v212
    %244 = vmatpush.msra.mxu0 %v211
    %245 = vmatmul.f32.gmra.mxu0 %v227
    %v246 = vpop.f32.mrf.mxu0
    %v247 = vadd.f32 %v223, %v246
    %248 = vdwg.mxu0
    %v249 = vmax.f32 %v247, 0.0
    %v250 = vld [vmem:[%s7] sm:$0xff]
    %v251 = vld [vmem:[%s7 + $0x8] sm:$0xff]
    %v252 = vld [vmem:[%s7 + $0x10] sm:$0xff]
    %v253 = vld [vmem:[%s7 + $0x18] sm:$0xff]
    %v254 = vld [vmem:[%s7 + $0x20] sm:$0xff]
    %v255 = vld [vmem:[%s7 + $0x28] sm:$0xff]
    %v256 = vld [vmem:[%s7 + $0x30] sm:$0xff]
    %v257 = vld [vmem:[%s7 + $0x38] sm:$0xff]
    %v258 = vld [vmem:[%s7 + $0x40] sm:$0xff]
    %v259 = vld [vmem:[%s8] sm:$0x1]
    %v261 = vperm.slane %v259, 0
    %vm263 = vcmask 588800
    %v265 = vsel %vm263, %v249, 0
    %267 = vmatpush.msra.mxu0 0.0
    %268 = vmatpush.msra.mxu0 0.0
    %269 = vmatpush.msra.mxu0 0.0
    %270 = vmatpush.msra.mxu0 0.0
    %271 = vmatpush.msra.mxu0 0.0
    %272 = vmatpush.msra.mxu0 0.0
    %273 = vmatpush.msra.mxu0 0.0
    %274 = vmatpush.msra.mxu0 %v258
    %275 = vmatpush.msra.mxu0 %v257
    %276 = vmatpush.msra.mxu0 %v256
    %277 = vmatpush.msra.mxu0 %v255
    %278 = vmatpush.msra.mxu0 %v254
    %279 = vmatpush.msra.mxu0 %v253
    %280 = vmatpush.msra.mxu0 %v252
    %281 = vmatpush.msra.mxu0 %v251
    %282 = vmatpush.msra.mxu0 %v250
    %283 = vmatmul.f32.gmra.mxu0 %v265
    %v284 = vpop.f32.mrf.mxu0
    %v285 = vadd.f32 %v261, %v284
    %286 = vdwg.mxu0
    %v287 = vmax.f32 %v285, 0.0
    %v288 = vld [vmem:[%s9] sm:$0xff]
    %v289 = vld [vmem:[%s9 + $0x8] sm:$0xff]
    %v290 = vld [vmem:[%s9 + $0x10] sm:$0xff]
    %v291 = vld [vmem:[%s9 + $0x18] sm:$0xff]
    %v292 = vld [vmem:[%s9 + $0x20] sm:$0xff]
    %v293 = vld [vmem:[%s9 + $0x28] sm:$0xff]
    %v294 = vld [vmem:[%s10] sm:$0x1]
    %v296 = vperm.slane %v294, 0
    %vm298 = vcmask 392192
    %v300 = vsel %vm298, %v287, 0
    %302 = vmatpush.msra.mxu0 0.0
    %303 = vmatpush.msra.mxu0 0.0
    %304 = vmatpush.msra.mxu0 0.0
    %305 = vmatpush.msra.mxu0 0.0
    %306 = vmatpush.msra.mxu0 0.0
    %307 = vmatpush.msra.mxu0 0.0
    %308 = vmatpush.msra.mxu0 0.0
    %309 = vmatpush.msra.mxu0 0.0
    %310 = vmatpush.msra.mxu0 0.0
    %311 = vmatpush.msra.mxu0 0.0
    %312 = vmatpush.msra.mxu0 %v293
    %313 = vmatpush.msra.mxu0 %v292
    %314 = vmatpush.msra.mxu0 %v291
    %315 = vmatpush.msra.mxu0 %v290
    %316 = vmatpush.msra.mxu0 %v289
    %317 = vmatpush.msra.mxu0 %v288
    %318 = vmatmul.f32.gmra.mxu0 %v300
    %v319 = vpop.f32.mrf.mxu0
    %v320 = vadd.f32 %v296, %v319
    %321 = vdwg.mxu0
    %vm322 = vcmp.gt.f32.partialorder %v320, 20.0
    %v323 = vmin.f32 %v320, 20.0
    %v324 = vmul.f32 %v323, 1.442695
    %v325 = vpow.pop %v324
    %v326 = vadd.f32 %v325, 1.0
    %v327 = vlog2.pop %v326
    %v328 = vmul.f32 %v327, 0.6931472
    %v329 = vmul.f32 -0.5, %v325
    %v330 = vadd.f32 %v329, 1.0
    %v331 = vmul.f32 %v330, %v325
    %v332 = vand.u32 2147483647, %v325
    %vm333 = vcmp.lt.f32.partialorder %v332, 0.0004427343
    %v334 = vsel %vm333, %v331, %v328
    %v335 = vsel %vm322, %v320, %v334
    %v336 = vlaneseq
    %v337 = vand.u32 %v336, 127
    %vm338 = vcmp.eq.s32.totalorder %v337, 1
    %v339 = vsel %vm338, %v335, %v320
    %340 = vst [vmem:[#allocation7] sm:$0xff] %v339
    // Predicated region
    $region54: #{tpu_custom_call.1} parent=1 // pred_check
      _
    $region55: #{tpu_custom_call.1} parent=1 // pred_check_branch
      %342 = sbr.rel (0) target = $region57
    $region56: #{tpu_custom_call.1} parent=1 // pred_region
      %344 = vsyncadd [#allocation4], 0
      %s346 = sshll.u32 [#allocation7], 4
      %s347 = int_to_ptr.vmem [resolvable:$true] %s346
      %s348 = sshll.u32 %s11, 4
      %s349 = int_to_ptr.hbm [resolvable:$true] %s348
      %351 = dma.vmem_to_hbm [thread:$0]  %s347, 128, %s349, [#allocation4]
    $region57: #{tpu_custom_call.1} parent=1 // pred_fallthru
      _
    // Predicated region
    $region58: #{tpu_custom_call.1} parent=1 // pred_check
      _
    $region59: #{tpu_custom_call.1} parent=1 // pred_check_branch
      %353 = sbr.rel (0) target = $region61
    $region60: #{tpu_custom_call.1} parent=1 // pred_region
      %355 = dma.done [#allocation4], 128
    $region61: #{tpu_custom_call.1} parent=1 // pred_fallthru
      _
    %356 = vsyncpa [#allocation3], 1
    %357 = vsyncpa [#allocation6], 1
    %358 = vsyncpa [#allocation4], 1

</llo_original>
